<compile_context>
chip_gen: v5e
topology: v5e:2x2
jax: 0.10.0
libtpu: 0.0.40
codegen_flags: <defaults>
</compile_context>

<pallas_src>
import math

import jax
import jax.numpy as jnp
from jax.experimental import pallas as pl
from jax.experimental.pallas import tpu as pltpu

SHAPE = (2, 4, 16, 16)           # N, C, H, W
DTYPE = jnp.float32
VALUE_RANGE = (-1.0, 1.0)

_LANES = 128
_TOTAL = math.prod(SHAPE)        # 2048
_ROWS = _TOTAL // _LANES         # 16
_FLAT_SHAPE = (_ROWS, _LANES)    # lane-dense 2-D slab


def _create_constant(shape, seed, value_range, dtype):
    """Deterministic stand-in for TensorUtils.create_torch_constant."""
    key = jax.random.PRNGKey(seed)
    lo, hi = value_range
    return jax.random.uniform(key, shape, dtype=dtype, minval=lo, maxval=hi)


def _const_eval_kernel(v1_ref, x_ref, y_ref, o_ref):
    # v2 = add(x, y); v3 = add(v1, v2)   (v1 = c1 + c2 folded outside)
    o_ref[...] = v1_ref[...] + (x_ref[...] + y_ref[...])


# Single full-array block, everything VMEM-resident, no grid, no pipelining.
_vmem_spec = pl.BlockSpec(memory_space=pltpu.MemorySpace.VMEM)

_fused_add = pl.pallas_call(
    _const_eval_kernel,
    out_shape=jax.ShapeDtypeStruct(_FLAT_SHAPE, DTYPE),
    in_specs=[_vmem_spec, _vmem_spec, _vmem_spec],
    out_specs=_vmem_spec,
)


class ModelConstEvalPass:
    """JAX/Pallas port of the PyTorch module (operator = element-wise add)."""

    def __init__(self):
        self.c1 = _create_constant(SHAPE, math.prod(SHAPE), VALUE_RANGE, DTYPE)
        self.c2 = _create_constant(SHAPE, sum(SHAPE), VALUE_RANGE, DTYPE)
        # Const-eval pass: v1 = operator(c1, c2) is a pure constant — fold it
        # once here and hand the kernel a single pre-summed slab.
        self._v1_flat = (self.c1 + self.c2).reshape(_FLAT_SHAPE)

    def forward(self, x, y):
        assert x.shape == y.shape == SHAPE
        out_flat = _fused_add(
            self._v1_flat,
            x.reshape(_FLAT_SHAPE),
            y.reshape(_FLAT_SHAPE),
        )
        return out_flat.reshape(SHAPE)


if __name__ == "__main__":
    model = ModelConstEvalPass()

    # Runtime inputs (deterministic).
    key = jax.random.PRNGKey(0)
    kx, ky = jax.random.split(key)
    x = jax.random.uniform(kx, SHAPE, dtype=DTYPE,
                           minval=VALUE_RANGE[0], maxval=VALUE_RANGE[1])
    y = jax.random.uniform(ky, SHAPE, dtype=DTYPE,
                           minval=VALUE_RANGE[0], maxval=VALUE_RANGE[1])

    out = model.forward(x, y)
    out = jax.block_until_ready(out)

    # Correctness check against plain-JAX reference.
    ref = (model.c1 + model.c2) + (x + y)
    assert out.shape == SHAPE and out.dtype == DTYPE
    assert jnp.allclose(out, ref, atol=1e-6, rtol=1e-6)

    print("KERNEL_OK")
</pallas_src>

<mosaic_0001>
module attributes {stable_mosaic.version = 11 : i64} {
  func.func @_const_eval_kernel(%arg0: memref<16x128xf32, #tpu.memory_space<vmem>>, %arg1: memref<16x128xf32, #tpu.memory_space<vmem>>, %arg2: memref<16x128xf32, #tpu.memory_space<vmem>>, %arg3: memref<16x128xf32, #tpu.memory_space<vmem>>) attributes {dimension_semantics = [], scalar_prefetch = 0 : i64, scratch_operands = 0 : i64, tpu.core_type = #tpu.core_type<tc>} {
    %c0 = arith.constant 0 : index
    %c0_0 = arith.constant 0 : index
    %0 = vector.load %arg0[%c0, %c0_0] : memref<16x128xf32, #tpu.memory_space<vmem>>, vector<16x128xf32>
    %c0_1 = arith.constant 0 : index
    %c0_2 = arith.constant 0 : index
    %1 = vector.load %arg1[%c0_1, %c0_2] : memref<16x128xf32, #tpu.memory_space<vmem>>, vector<16x128xf32>
    %c0_3 = arith.constant 0 : index
    %c0_4 = arith.constant 0 : index
    %2 = vector.load %arg2[%c0_3, %c0_4] : memref<16x128xf32, #tpu.memory_space<vmem>>, vector<16x128xf32>
    %3 = arith.addf %1, %2 : vector<16x128xf32>
    %4 = arith.addf %0, %3 : vector<16x128xf32>
    %c0_5 = arith.constant 0 : index
    %c0_6 = arith.constant 0 : index
    %5 = vector.load %arg3[%c0_5, %c0_6] : memref<16x128xf32, #tpu.memory_space<vmem>>, vector<16x128xf32>
    tpu.vector_store %arg3[%c0_5, %c0_6], %4 {strides = array<i32>} : memref<16x128xf32, #tpu.memory_space<vmem>>, vector<16x128xf32>,
    return
  }
}

</mosaic_0001>

<llo_original>
// kernel: tpu_custom_call.1
$region0: #{tpu_custom_call.1}
  #allocation0 [shape = 'u32[]', space=smem, size = 0x4, offset = 0x4, fixed_abs, tag = 'smem constant byte address 0x4 - core index']
  #allocation1 [shape = 'u32[72,128]{1,0:T(1,128)}', space=vmem, size = 0x9000, scoped, tag = 'internal scratch']
  %s0 = inlined_call_operand.hbm [shape: f32[16,128], index: 0, kind: input, shape index: {}]
  %s1 = inlined_call_operand.hbm [shape: f32[16,128], index: 1, kind: input, shape index: {}]
  %s2 = inlined_call_operand.hbm [shape: f32[16,128], index: 2, kind: input, shape index: {}]
  %s3 = inlined_call_operand.hbm [shape: f32[16,128], index: 3, kind: output, shape index: {}]
  %s4 = sld [smem:[#allocation0]]
  $region34: #{tpu_custom_call.1} parent=0
    _
  %s6 = ssub.s32 1, %s4
  %s7 = scalar_select 0, %s6, %s4
  $region1: #{tpu_custom_call.1} parent=0
    #allocation2 [shape = 'u8[8192]{0}', space=vmem, size = 0x2000, scoped, tag = 'input window, operand 0, single buffered']
    #allocation3 [shape = 's32[1]{0}', space=sflag, size = 0x4, scoped, tag = 'scoped memory for tpu_custom_call.1']
    #allocation4 [shape = 's32[1]{0}', space=sflag, size = 0x4, scoped, tag = 'scoped memory for tpu_custom_call.1']
    #allocation5 [shape = 'u8[8192]{0}', space=vmem, size = 0x2000, scoped, tag = 'input window, operand 1, single buffered']
    #allocation6 [shape = 's32[1]{0}', space=sflag, size = 0x4, scoped, tag = 'scoped memory for tpu_custom_call.1']
    #allocation7 [shape = 'u8[8192]{0}', space=vmem, size = 0x2000, scoped, tag = 'input window, operand 2, single buffered']
    #allocation8 [shape = 'u8[8192]{0}', space=vmem, size = 0x2000, scoped, tag = 'output window, operand 0, single buffered']
    %8 = vsyncpa [#allocation3], 0
    %9 = vsyncpa [#allocation6], 0
    %10 = vsyncpa [#allocation4], 0
    // Predicated region
    $region2: #{tpu_custom_call.1} parent=1 // pred_check
      _
    $region3: #{tpu_custom_call.1} parent=1 // pred_check_branch
      %12 = sbr.rel (0) target = $region5
    $region4: #{tpu_custom_call.1} parent=1 // pred_region
      %14 = vsyncadd [#allocation3], 0
      %s15 = sshll.u32 %s0, 4
      %s16 = int_to_ptr.hbm [resolvable:$true] %s15
      %s17 = sshll.u32 [#allocation2], 4
      %s18 = int_to_ptr.vmem [resolvable:$true] %s17
      %23 = dma.hbm_to_vmem [thread:$0]  %s16, 256, %s18, [#allocation3], 128, 128, 8
    $region5: #{tpu_custom_call.1} parent=1 // pred_fallthru
      _
    // Predicated region
    $region6: #{tpu_custom_call.1} parent=1 // pred_check
      _
    $region7: #{tpu_custom_call.1} parent=1 // pred_check_branch
      %25 = sbr.rel (0) target = $region9
    $region8: #{tpu_custom_call.1} parent=1 // pred_region
      %27 = vsyncadd [#allocation6], 0
      %s28 = sshll.u32 %s1, 4
      %s29 = int_to_ptr.hbm [resolvable:$true] %s28
      %s30 = sshll.u32 [#allocation5], 4
      %s31 = int_to_ptr.vmem [resolvable:$true] %s30
      %36 = dma.hbm_to_vmem [thread:$0]  %s29, 256, %s31, [#allocation6], 128, 128, 8
    $region9: #{tpu_custom_call.1} parent=1 // pred_fallthru
      _
    // Predicated region
    $region10: #{tpu_custom_call.1} parent=1 // pred_check
      _
    $region11: #{tpu_custom_call.1} parent=1 // pred_check_branch
      %38 = sbr.rel (0) target = $region13
    $region12: #{tpu_custom_call.1} parent=1 // pred_region
      %40 = vsyncadd [#allocation6], 0
      %s41 = sshll.u32 %s2, 4
      %s42 = int_to_ptr.hbm [resolvable:$true] %s41
      %s43 = sshll.u32 [#allocation7], 4
      %s44 = int_to_ptr.vmem [resolvable:$true] %s43
      %49 = dma.hbm_to_vmem [thread:$0]  %s42, 256, %s44, [#allocation6], 128, 128, 8
    $region13: #{tpu_custom_call.1} parent=1 // pred_fallthru
      _
    // Predicated region
    $region14: #{tpu_custom_call.1} parent=1 // pred_check
      _
    $region15: #{tpu_custom_call.1} parent=1 // pred_check_branch
      %51 = sbr.rel (0) target = $region17
    $region16: #{tpu_custom_call.1} parent=1 // pred_region
      %53 = dma.done [#allocation3], 256
    $region17: #{tpu_custom_call.1} parent=1 // pred_fallthru
      _
    // Predicated region
    $region18: #{tpu_custom_call.1} parent=1 // pred_check
      _
    $region19: #{tpu_custom_call.1} parent=1 // pred_check_branch
      %55 = sbr.rel (0) target = $region21
    $region20: #{tpu_custom_call.1} parent=1 // pred_region
      %57 = dma.done [#allocation6], 256
    $region21: #{tpu_custom_call.1} parent=1 // pred_fallthru
      _
    // Predicated region
    $region22: #{tpu_custom_call.1} parent=1 // pred_check
      _
    $region23: #{tpu_custom_call.1} parent=1 // pred_check_branch
      %59 = sbr.rel (0) target = $region25
    $region24: #{tpu_custom_call.1} parent=1 // pred_region
      %61 = dma.done [#allocation6], 256
    $region25: #{tpu_custom_call.1} parent=1 // pred_fallthru
      _
    %v62 = vld [vmem:[#allocation2] sm:$0xff]
    %v63 = vld [vmem:[#allocation2 + $0x8] sm:$0xff]
    %v64 = vld [vmem:[#allocation5] sm:$0xff]
    %v65 = vld [vmem:[#allocation5 + $0x8] sm:$0xff]
    %v66 = vld [vmem:[#allocation7] sm:$0xff]
    %v67 = vld [vmem:[#allocation7 + $0x8] sm:$0xff]
    %v68 = vadd.f32 %v64, %v66
    %v69 = vadd.f32 %v65, %v67
    %v70 = vadd.f32 %v62, %v68
    %v71 = vadd.f32 %v63, %v69
    %72 = vst [vmem:[#allocation8] sm:$0xff] %v70
    %73 = vst [vmem:[#allocation8 + $0x8] sm:$0xff] %v71
    // Predicated region
    $region26: #{tpu_custom_call.1} parent=1 // pred_check
      _
    $region27: #{tpu_custom_call.1} parent=1 // pred_check_branch
      %75 = sbr.rel (0) target = $region29
    $region28: #{tpu_custom_call.1} parent=1 // pred_region
      %77 = vsyncadd [#allocation4], 0
      %s78 = sshll.u32 [#allocation8], 4
      %s79 = int_to_ptr.vmem [resolvable:$true] %s78
      %s80 = sshll.u32 %s3, 4
      %s81 = int_to_ptr.hbm [resolvable:$true] %s80
      %86 = dma.vmem_to_hbm [thread:$0]  %s79, 256, %s81, [#allocation4], 128, 128, 8
    $region29: #{tpu_custom_call.1} parent=1 // pred_fallthru
      _
    // Predicated region
    $region30: #{tpu_custom_call.1} parent=1 // pred_check
      _
    $region31: #{tpu_custom_call.1} parent=1 // pred_check_branch
      %88 = sbr.rel (0) target = $region33
    $region32: #{tpu_custom_call.1} parent=1 // pred_region
      %90 = dma.done [#allocation4], 256
    $region33: #{tpu_custom_call.1} parent=1 // pred_fallthru
      _
    %91 = vsyncpa [#allocation3], 1
    %92 = vsyncpa [#allocation6], 1
    %93 = vsyncpa [#allocation4], 1

</llo_original>
